<compile_context>
chip_gen: v7x
topology: tpu7x:2x2x1
jax: 0.10.0
libtpu: 0.0.40
codegen_flags: <defaults>
</compile_context>

<pallas_src>
import functools

import jax
import jax.numpy as jnp
from jax.experimental import pallas as pl
from jax.experimental.pallas import tpu as pltpu

INPUT_SIZE = 7
HIDDEN_SIZE = 64
NUM_CLASSES = 7

IN_PAD = 8      # 7 input features + 1 constant-ones row (folded fc1 bias)
OUT_PAD = 8     # output classes padded 7 -> 8 sublanes
LANE = 128      # batch tile must be a multiple of the 128-lane width


def _round_up(n, m):
    return ((n + m - 1) // m) * m


def stylenet_kernel(x_ref, w1_ref, w2_ref, b2_ref, w3_ref, b3_ref, o_ref, xs_ref):
    """One batch tile.

    x_ref:  (tile_b, 7)  f32, natural layout (streams, double-buffered)
    xs_ref: (8, tile_b)  f32 scratch: rows 0..6 = x^T, row 7 = 1.0 (fc1 bias fold)
    w1_ref: (64, 8) f32 (col 7 = b1), w2_ref: (64,64) bf16, w3_ref: (8,64) bf16
    o_ref:  (8, tile_b) transposed logits (lane-dense output)
    """
    tile_b = x_ref.shape[0]

    # In-kernel relayout (replaces the old wrapper-side pad/transpose HBM pass).
    # Rewritten every grid step -> no cross-step state, safe under "parallel".
    xs_ref[INPUT_SIZE:IN_PAD, :] = jnp.ones((IN_PAD - INPUT_SIZE, tile_b), jnp.float32)
    xs_ref[0:INPUT_SIZE, :] = x_ref[...].T

    # fc1 (+ folded bias) + relu, full f32 (K=8, MXU cost negligible).
    h = jnp.dot(w1_ref[...], xs_ref[...], preferred_element_type=jnp.float32)  # (64, T)
    h = jnp.maximum(h, 0.0)
    # TODO(synk): dropout(p=0.2) is identity at inference; training-mode RNG masking not implemented.

    # fc2 + relu (bf16 MXU inputs, f32 accumulation / element-wise; v5e-safe).
    h = jnp.dot(w2_ref[...], h.astype(jnp.bfloat16),
                preferred_element_type=jnp.float32)                            # (64, T)
    h = jnp.maximum(h + b2_ref[...], 0.0)

    # fc3 (logits, no activation); lane-dense (8, T) store, bf16 by default.
    out = jnp.dot(w3_ref[...], h.astype(jnp.bfloat16),
                  preferred_element_type=jnp.float32)                          # (8, T)
    o_ref[...] = (out + b3_ref[...]).astype(o_ref.dtype)


def prepare_params(params):
    """Pad/cast PyTorch-layout params (W: [out, in], b: [out]) to kernel layout."""
    w1, b1, w2, b2, w3, b3 = params
    # fc1: keep f32 and fold the bias into an extra column (multiplies the ones row).
    w1p = jnp.concatenate(
        [w1.astype(jnp.float32), b1.reshape(HIDDEN_SIZE, 1).astype(jnp.float32)], axis=1)
    w2p = w2.astype(jnp.bfloat16)
    b2p = b2.reshape(HIDDEN_SIZE, 1).astype(jnp.float32)
    w3p = jnp.zeros((OUT_PAD, HIDDEN_SIZE), jnp.bfloat16).at[:NUM_CLASSES, :].set(
        w3.astype(jnp.bfloat16))
    b3p = jnp.zeros((OUT_PAD, 1), jnp.float32).at[:NUM_CLASSES, 0].set(
        b3.astype(jnp.float32))
    return w1p, w2p, b2p, w3p, b3p


def _vmem_limit_bytes(tile_b, out_itemsize):
    """Scoped-VMEM budget sized to the actual buffers (default limit is only
    16 MiB on v5e / 32 MiB on v6e+)."""
    x_blocks = 2 * tile_b * LANE * 4            # (tile_b, 7) f32 blocks lane-pad to 128, double-buffered
    xs = tile_b * IN_PAD * 4                    # relayout scratch
    h_f32 = 2 * tile_b * HIDDEN_SIZE * 4        # two live f32 hidden activations
    h_bf16 = 2 * tile_b * HIDDEN_SIZE * 2       # bf16 copies fed to the MXU
    o_blocks = 2 * tile_b * OUT_PAD * out_itemsize
    weights = 64 * 1024
    est = x_blocks + xs + h_f32 + h_bf16 + o_blocks + weights
    return int(min(max(est * 3 // 2, 32 * 2 ** 20), 100 * 2 ** 20))


@functools.partial(jax.jit, static_argnames=("tile_b", "transposed_output", "out_dtype"))
def stylenet_forward(x, params, tile_b=16384, transposed_output=False,
                     out_dtype=jnp.bfloat16):
    """x: (B, 7) float32.

    transposed_output=False (default): returns (B, 7) float32 logits (module parity).
    transposed_output=True: returns (NUM_CLASSES, B) `out_dtype` logits in the
      kernel's native lane-dense layout (skips the epilogue transpose HBM pass).

    tile_b: batch tile width (forced to a multiple of 128). 16384 is safe on all
    generations (fits v7x's 64 MiB VMEM); on v5e/v6e it can be raised toward 32768.
    """
    w1p, w2p, b2p, w3p, b3p = prepare_params(params)

    B = x.shape[0]
    # Guard: multiple of 128 AFTER the min() clamp, and never smaller than one lane tile.
    tile_b = min(tile_b, _round_up(max(B, 1), LANE))
    tile_b = _round_up(max(tile_b, LANE), LANE)
    b_pad = _round_up(max(B, 1), tile_b)
    num_tiles = b_pad // tile_b
    # NOTE: x itself is NOT padded; the ragged last block is handled by Pallas and
    # the garbage batch columns land in the padded output region (sliced off below).

    def _const(a):  # full-array block, same tile every step -> stays resident in VMEM
        return pl.BlockSpec(a.shape, lambda i: (0,) * a.ndim)

    outT = pl.pallas_call(
        stylenet_kernel,
        out_shape=jax.ShapeDtypeStruct((OUT_PAD, b_pad), out_dtype),
        grid_spec=pltpu.PrefetchScalarGridSpec(
            num_scalar_prefetch=0,
            grid=(num_tiles,),
            in_specs=[
                pl.BlockSpec((tile_b, INPUT_SIZE), lambda i: (i, 0)),   # x, natural layout
                _const(w1p), _const(w2p), _const(b2p), _const(w3p), _const(b3p),
            ],
            out_specs=pl.BlockSpec((OUT_PAD, tile_b), lambda i: (0, i)),
            scratch_shapes=[pltpu.VMEM((IN_PAD, tile_b), jnp.float32)],
        ),
        compiler_params=pltpu.CompilerParams(
            # Batch tiles are independent -> megacore sharding.  On v7x, if xprof
            # shows only one TensorCore busy, switch to pltpu.CORE_PARALLEL.
            dimension_semantics=("parallel",),
            vmem_limit_bytes=_vmem_limit_bytes(tile_b, jnp.dtype(out_dtype).itemsize),
        ),
    )(x, w1p, w2p, b2p, w3p, b3p)

    if transposed_output:
        return outT[:NUM_CLASSES, :B]
    # Module-parity epilogue: (B, 7) float32.  For a memory-bound pipeline prefer
    # transposed_output=True so the consumer takes the (7, B) layout directly.
    return outT[:NUM_CLASSES, :B].T.astype(jnp.float32)


def init_params(key):
    """Deterministic init matching nn.Linear conventions: W is [out, in], b is [out]."""
    k1, k2, k3, k4, k5, k6 = jax.random.split(key, 6)

    def linear(kw, kb, fan_in, fan_out):
        bound = 1.0 / jnp.sqrt(jnp.float32(fan_in))
        w = jax.random.uniform(kw, (fan_out, fan_in), jnp.float32, -bound, bound)
        b = jax.random.uniform(kb, (fan_out,), jnp.float32, -bound, bound)
        return w, b

    w1, b1 = linear(k1, k2, INPUT_SIZE, HIDDEN_SIZE)
    w2, b2 = linear(k3, k4, HIDDEN_SIZE, HIDDEN_SIZE)
    w3, b3 = linear(k5, k6, HIDDEN_SIZE, NUM_CLASSES)
    return w1, b1, w2, b2, w3, b3


def reference_fp32(x, params):
    """Plain-JAX fp32 reference with the original module's semantics (dropout = identity)."""
    w1, b1, w2, b2, w3, b3 = params
    h = jnp.maximum(x @ w1.T + b1, 0.0)
    h = jnp.maximum(h @ w2.T + b2, 0.0)
    return h @ w3.T + b3


if __name__ == "__main__":
    key = jax.random.PRNGKey(0)
    kx, kx2, kp = jax.random.split(key, 3)
    params = init_params(kp)

    # Small batch (single ragged tile: batch < one 128-lane tile).
    x_small = jax.random.normal(kx, (8, INPUT_SIZE), dtype=jnp.float32)
    out_small = jax.block_until_ready(stylenet_forward(x_small, params))
    ref_small = reference_fp32(x_small, params)
    assert out_small.shape == (8, NUM_CLASSES)
    assert out_small.dtype == jnp.float32
    assert jnp.allclose(out_small, ref_small, atol=5e-2, rtol=5e-2), (
        f"max abs err = {jnp.max(jnp.abs(out_small - ref_small))}")

    # Multi-tile path with a ragged last tile (grid of 2, tile_b=256, batch=300).
    x_big = jax.random.normal(kx2, (300, INPUT_SIZE), dtype=jnp.float32)
    out_big = jax.block_until_ready(stylenet_forward(x_big, params, tile_b=256))
    ref_big = reference_fp32(x_big, params)
    assert out_big.shape == (300, NUM_CLASSES)
    assert jnp.allclose(out_big, ref_big, atol=5e-2, rtol=5e-2), (
        f"max abs err = {jnp.max(jnp.abs(out_big - ref_big))}")

    print("KERNEL_OK")
</pallas_src>

<mosaic_0001>
module attributes {stable_mosaic.version = 11 : i64} {
  func.func @stylenet_kernel(%arg0: i32, %arg1: memref<128x7xf32, #tpu.memory_space<vmem>>, %arg2: memref<64x8xf32, #tpu.memory_space<vmem>>, %arg3: memref<64x64xbf16, #tpu.memory_space<vmem>>, %arg4: memref<64x1xf32, #tpu.memory_space<vmem>>, %arg5: memref<8x64xbf16, #tpu.memory_space<vmem>>, %arg6: memref<8x1xf32, #tpu.memory_space<vmem>>, %arg7: memref<8x128xbf16, #tpu.memory_space<vmem>>, %arg8: memref<8x128xf32, #tpu.memory_space<vmem>>) attributes {dimension_semantics = [#tpu.dimension_semantics<parallel>], iteration_bounds = array<i64: 1>, scalar_prefetch = 0 : i64, scratch_operands = 1 : i64, tpu.core_type = #tpu.core_type<tc>, window_params = [{transform_indices = @transform_0, window_bounds = array<i64: 128, 7>}, {pipeline_mode = #tpu.pipeline_mode<synchronous>, transform_indices = @transform_1, window_bounds = array<i64: 64, 8>}, {pipeline_mode = #tpu.pipeline_mode<synchronous>, transform_indices = @transform_2, window_bounds = array<i64: 64, 64>}, {pipeline_mode = #tpu.pipeline_mode<synchronous>, transform_indices = @transform_3, window_bounds = array<i64: 64, 1>}, {pipeline_mode = #tpu.pipeline_mode<synchronous>, transform_indices = @transform_4, window_bounds = array<i64: 8, 64>}, {pipeline_mode = #tpu.pipeline_mode<synchronous>, transform_indices = @transform_5, window_bounds = array<i64: 8, 1>}, {transform_indices = @transform_6, window_bounds = array<i64: 8, 128>}]} {
    %cst = arith.constant 1.000000e+00 : f32
    %0 = vector.broadcast %cst : f32 to vector<1x128xf32>
    %c7 = arith.constant 7 : index
    %c0 = arith.constant 0 : index
    %1 = vector.load %arg8[%c7, %c0] : memref<8x128xf32, #tpu.memory_space<vmem>>, vector<1x128xf32>
    tpu.vector_store %arg8[%c7, %c0], %0 {strides = array<i32>} : memref<8x128xf32, #tpu.memory_space<vmem>>, vector<1x128xf32>,
    %c0_0 = arith.constant 0 : index
    %c0_1 = arith.constant 0 : index
    %2 = vector.load %arg1[%c0_0, %c0_1] : memref<128x7xf32, #tpu.memory_space<vmem>>, vector<128x7xf32>
    %3 = tpu.transpose %2, [1, 0] : vector<128x7xf32> -> vector<7x128xf32>
    %c0_2 = arith.constant 0 : index
    %c0_3 = arith.constant 0 : index
    %4 = vector.load %arg8[%c0_2, %c0_3] : memref<8x128xf32, #tpu.memory_space<vmem>>, vector<7x128xf32>
    tpu.vector_store %arg8[%c0_2, %c0_3], %3 {strides = array<i32>} : memref<8x128xf32, #tpu.memory_space<vmem>>, vector<7x128xf32>,
    %c0_4 = arith.constant 0 : index
    %c0_5 = arith.constant 0 : index
    %5 = vector.load %arg2[%c0_4, %c0_5] : memref<64x8xf32, #tpu.memory_space<vmem>>, vector<64x8xf32>
    %c0_6 = arith.constant 0 : index
    %c0_7 = arith.constant 0 : index
    %6 = vector.load %arg8[%c0_6, %c0_7] : memref<8x128xf32, #tpu.memory_space<vmem>>, vector<8x128xf32>
    %cst_8 = arith.constant dense<0.000000e+00> : vector<64x128xf32>
    %7 = tpu.matmul %5, %6, %cst_8 {dimension_numbers = #tpu.dot_dimension_numbers<[1], [0], [0], [1], [0, 0, 1, 1], [], []>} : vector<64x8xf32>, vector<8x128xf32>, vector<64x128xf32> -> vector<64x128xf32>
    %cst_9 = arith.constant 0.000000e+00 : f32
    %8 = vector.broadcast %cst_9 : f32 to vector<64x128xf32>
    %9 = arith.maximumf %7, %8 : vector<64x128xf32>
    %c0_10 = arith.constant 0 : index
    %c0_11 = arith.constant 0 : index
    %10 = vector.load %arg3[%c0_10, %c0_11] : memref<64x64xbf16, #tpu.memory_space<vmem>>, vector<64x64xbf16>
    %11 = arith.truncf %9 : vector<64x128xf32> to vector<64x128xbf16>
    %cst_12 = arith.constant dense<0.000000e+00> : vector<64x128xf32>
    %12 = tpu.matmul %10, %11, %cst_12 {dimension_numbers = #tpu.dot_dimension_numbers<[1], [0], [0], [1], [0, 0, 1, 1], [], []>} : vector<64x64xbf16>, vector<64x128xbf16>, vector<64x128xf32> -> vector<64x128xf32>
    %c0_13 = arith.constant 0 : index
    %c0_14 = arith.constant 0 : index
    %13 = vector.load %arg4[%c0_13, %c0_14] : memref<64x1xf32, #tpu.memory_space<vmem>>, vector<64x1xf32>
    %14 = vector.broadcast %13 : vector<64x1xf32> to vector<64x128xf32>
    %15 = arith.addf %12, %14 : vector<64x128xf32>
    %cst_15 = arith.constant 0.000000e+00 : f32
    %16 = vector.broadcast %cst_15 : f32 to vector<64x128xf32>
    %17 = arith.maximumf %15, %16 : vector<64x128xf32>
    %c0_16 = arith.constant 0 : index
    %c0_17 = arith.constant 0 : index
    %18 = vector.load %arg5[%c0_16, %c0_17] : memref<8x64xbf16, #tpu.memory_space<vmem>>, vector<8x64xbf16>
    %19 = arith.truncf %17 : vector<64x128xf32> to vector<64x128xbf16>
    %cst_18 = arith.constant dense<0.000000e+00> : vector<8x128xf32>
    %20 = tpu.matmul %18, %19, %cst_18 {dimension_numbers = #tpu.dot_dimension_numbers<[1], [0], [0], [1], [0, 0, 1, 1], [], []>} : vector<8x64xbf16>, vector<64x128xbf16>, vector<8x128xf32> -> vector<8x128xf32>
    %c0_19 = arith.constant 0 : index
    %c0_20 = arith.constant 0 : index
    %21 = vector.load %arg6[%c0_19, %c0_20] : memref<8x1xf32, #tpu.memory_space<vmem>>, vector<8x1xf32>
    %22 = vector.broadcast %21 : vector<8x1xf32> to vector<8x128xf32>
    %23 = arith.addf %20, %22 : vector<8x128xf32>
    %24 = arith.truncf %23 : vector<8x128xf32> to vector<8x128xbf16>
    %c0_21 = arith.constant 0 : index
    %c0_22 = arith.constant 0 : index
    %25 = vector.load %arg7[%c0_21, %c0_22] : memref<8x128xbf16, #tpu.memory_space<vmem>>, vector<8x128xbf16>
    tpu.vector_store %arg7[%c0_21, %c0_22], %24 {strides = array<i32>} : memref<8x128xbf16, #tpu.memory_space<vmem>>, vector<8x128xbf16>,
    return
  }
  func.func @transform_0(%arg0: i32) -> (i32, i32) {
    %c0_i32 = arith.constant 0 : i32
    %c0_i32_0 = arith.constant 0 : i32
    return %arg0, %c0_i32 : i32, i32
  }
  func.func @transform_1(%arg0: i32) -> (i32, i32) {
    %c0_i32 = arith.constant 0 : i32
    %c0_i32_0 = arith.constant 0 : i32
    %c0_i32_1 = arith.constant 0 : i32
    return %c0_i32, %c0_i32_0 : i32, i32
  }
  func.func @transform_2(%arg0: i32) -> (i32, i32) {
    %c0_i32 = arith.constant 0 : i32
    %c0_i32_0 = arith.constant 0 : i32
    %c0_i32_1 = arith.constant 0 : i32
    return %c0_i32, %c0_i32_0 : i32, i32
  }
  func.func @transform_3(%arg0: i32) -> (i32, i32) {
    %c0_i32 = arith.constant 0 : i32
    %c0_i32_0 = arith.constant 0 : i32
    %c0_i32_1 = arith.constant 0 : i32
    return %c0_i32, %c0_i32_0 : i32, i32
  }
  func.func @transform_4(%arg0: i32) -> (i32, i32) {
    %c0_i32 = arith.constant 0 : i32
    %c0_i32_0 = arith.constant 0 : i32
    %c0_i32_1 = arith.constant 0 : i32
    return %c0_i32, %c0_i32_0 : i32, i32
  }
  func.func @transform_5(%arg0: i32) -> (i32, i32) {
    %c0_i32 = arith.constant 0 : i32
    %c0_i32_0 = arith.constant 0 : i32
    %c0_i32_1 = arith.constant 0 : i32
    return %c0_i32, %c0_i32_0 : i32, i32
  }
  func.func @transform_6(%arg0: i32) -> (i32, i32) {
    %c0_i32 = arith.constant 0 : i32
    %c0_i32_0 = arith.constant 0 : i32
    return %c0_i32, %arg0 : i32, i32
  }
}

</mosaic_0001>

<llo_original>
// kernel: stylenet_forward.1
$region0: #{stylenet_forward.1}
  #allocation0 [shape = 'u32[]', space=smem, size = 0x4, offset = 0x4, fixed_abs, tag = 'smem constant byte address 0x4 - core index']
  #allocation1 [shape = 'u32[144,128]{1,0:T(1,128)}', space=vmem, size = 0x12000, scoped, tag = 'internal scratch']
  #allocation2 [shape = 'f32[8,128]{1,0:T(8,128)}', space=vmem, size = 0x1000, scoped, tag = 'scratch operand']
  %s0 = inlined_call_operand.vmem [shape: f32[8,7], index: 0, kind: input, shape index: {}]
  %s1 = inlined_call_operand.vmem [shape: f32[64,8], index: 1, kind: input, shape index: {}]
  %s2 = inlined_call_operand.vmem [shape: bf16[64,64], index: 2, kind: input, shape index: {}]
  %s3 = inlined_call_operand.vmem [shape: f32[64,1], index: 3, kind: input, shape index: {}]
  %s4 = inlined_call_operand.vmem [shape: bf16[8,64], index: 4, kind: input, shape index: {}]
  %s5 = inlined_call_operand.vmem [shape: f32[8,1], index: 5, kind: input, shape index: {}]
  %s6 = inlined_call_operand.vmem [shape: bf16[8,128], index: 6, kind: output, shape index: {}]
  %s7 = sld [smem:[#allocation0]]
  $region34: #{stylenet_forward.1} parent=0
    _
  %s9 = ssub.s32 1, %s7
  %s10 = scalar_select 0, %s9, %s7
  // Predicated region
  $region2: #{stylenet_forward.1} parent=0 // pred_check
    _
  $region3: #{stylenet_forward.1} parent=0 // pred_check_branch
    %12 = sbr.rel (0) target = $region5
  $region4: #{stylenet_forward.1} parent=0 // pred_region
    _
  $region5: #{stylenet_forward.1} parent=0 // pred_fallthru
    _
  // Predicated region
  $region6: #{stylenet_forward.1} parent=0 // pred_check
    _
  $region7: #{stylenet_forward.1} parent=0 // pred_check_branch
    %14 = sbr.rel (0) target = $region9
  $region8: #{stylenet_forward.1} parent=0 // pred_region
    _
  $region9: #{stylenet_forward.1} parent=0 // pred_fallthru
    _
  // Predicated region
  $region10: #{stylenet_forward.1} parent=0 // pred_check
    _
  $region11: #{stylenet_forward.1} parent=0 // pred_check_branch
    %16 = sbr.rel (0) target = $region13
  $region12: #{stylenet_forward.1} parent=0 // pred_region
    _
  $region13: #{stylenet_forward.1} parent=0 // pred_fallthru
    _
  // Predicated region
  $region14: #{stylenet_forward.1} parent=0 // pred_check
    _
  $region15: #{stylenet_forward.1} parent=0 // pred_check_branch
    %18 = sbr.rel (0) target = $region17
  $region16: #{stylenet_forward.1} parent=0 // pred_region
    _
  $region17: #{stylenet_forward.1} parent=0 // pred_fallthru
    _
  // Predicated region
  $region18: #{stylenet_forward.1} parent=0 // pred_check
    _
  $region19: #{stylenet_forward.1} parent=0 // pred_check_branch
    %20 = sbr.rel (0) target = $region21
  $region20: #{stylenet_forward.1} parent=0 // pred_region
    _
  $region21: #{stylenet_forward.1} parent=0 // pred_fallthru
    _
  // Predicated region
  $region22: #{stylenet_forward.1} parent=0 // pred_check
    _
  $region23: #{stylenet_forward.1} parent=0 // pred_check_branch
    %22 = sbr.rel (0) target = $region25
  $region24: #{stylenet_forward.1} parent=0 // pred_region
    _
  $region25: #{stylenet_forward.1} parent=0 // pred_fallthru
    _
  %24 = vst [vmem:[#allocation2 + $0x7] sm:$0x1] 1.0
  %v25 = vld [vmem:[%s0] sm:$0xff]
  %v26 = vld [vmem:[%s0 + $0x8] sm:$0xff]
  %v27 = vld [vmem:[%s0 + $0x10] sm:$0xff]
  %v28 = vld [vmem:[%s0 + $0x18] sm:$0xff]
  %v29 = vld [vmem:[%s0 + $0x20] sm:$0xff]
  %v30 = vld [vmem:[%s0 + $0x28] sm:$0xff]
  %v31 = vld [vmem:[%s0 + $0x30] sm:$0xff]
  %v32 = vld [vmem:[%s0 + $0x38] sm:$0xff]
  %v33 = vld [vmem:[%s0 + $0x40] sm:$0xff]
  %v34 = vld [vmem:[%s0 + $0x48] sm:$0xff]
  %v35 = vld [vmem:[%s0 + $0x50] sm:$0xff]
  %v36 = vld [vmem:[%s0 + $0x58] sm:$0xff]
  %v37 = vld [vmem:[%s0 + $0x60] sm:$0xff]
  %v38 = vld [vmem:[%s0 + $0x68] sm:$0xff]
  %v39 = vld [vmem:[%s0 + $0x70] sm:$0xff]
  %v40 = vld [vmem:[%s0 + $0x78] sm:$0xff]
  %41 = vxpose.xlu0.b32.start [1/16] %v25, 128
  %42 = vxpose.xlu0.b32.cont [2/16] %v26, 128
  %43 = vxpose.xlu0.b32.cont [3/16] %v27, 128
  %44 = vxpose.xlu0.b32.cont [4/16] %v28, 128
  %45 = vxpose.xlu0.b32.cont [5/16] %v29, 128
  %46 = vxpose.xlu0.b32.cont [6/16] %v30, 128
  %47 = vxpose.xlu0.b32.cont [7/16] %v31, 128
  %48 = vxpose.xlu0.b32.cont [8/16] %v32, 128
  %49 = vxpose.xlu0.b32.cont [9/16] %v33, 128
  %50 = vxpose.xlu0.b32.cont [10/16] %v34, 128
  %51 = vxpose.xlu0.b32.cont [11/16] %v35, 128
  %52 = vxpose.xlu0.b32.cont [12/16] %v36, 128
  %53 = vxpose.xlu0.b32.cont [13/16] %v37, 128
  %54 = vxpose.xlu0.b32.cont [14/16] %v38, 128
  %55 = vxpose.xlu0.b32.cont [15/16] %v39, 128
  %56 = vxpose.xlu0.b32.end [16/16] %v40, 128
  %v57 = vpop.trf.xlu0
  %v58 = vpop.trf.xlu0
  %v59 = vpop.trf.xlu0
  %v60 = vpop.trf.xlu0
  %v61 = vpop.trf.xlu0
  %v62 = vpop.trf.xlu0
  %v63 = vpop.trf.xlu0
  %v64 = vpop.trf.xlu0
  %v65 = vpop.trf.xlu0
  %v66 = vpop.trf.xlu0
  %v67 = vpop.trf.xlu0
  %v68 = vpop.trf.xlu0
  %v69 = vpop.trf.xlu0
  %v70 = vpop.trf.xlu0
  %v71 = vpop.trf.xlu0
  %v72 = vpop.trf.xlu0
  %73 = vst [vmem:[#allocation2] sm:$0x7f] %v57
  %v74 = vld [vmem:[%s1] sm:$0xff]
  %v75 = vld [vmem:[%s1 + $0x8] sm:$0xff]
  %v76 = vld [vmem:[%s1 + $0x10] sm:$0xff]
  %v77 = vld [vmem:[%s1 + $0x18] sm:$0xff]
  %v78 = vld [vmem:[%s1 + $0x20] sm:$0xff]
  %v79 = vld [vmem:[%s1 + $0x28] sm:$0xff]
  %v80 = vld [vmem:[%s1 + $0x30] sm:$0xff]
  %v81 = vld [vmem:[%s1 + $0x38] sm:$0xff]
  %v82 = vld [vmem:[#allocation2] sm:$0xff]
  %vm83 = vcmask 64512
  %v85 = vsel %vm83, %v74, 0
  %v88 = vsel %vm83, %v75, 0
  %v91 = vsel %vm83, %v76, 0
  %v94 = vsel %vm83, %v77, 0
  %v97 = vsel %vm83, %v78, 0
  %v100 = vsel %vm83, %v79, 0
  %v103 = vsel %vm83, %v80, 0
  %v106 = vsel %vm83, %v81, 0
  %108 = vmatprep.subr.mxu0 0.0
  %109 = vmatpush1.msra.mxu0 %v82
  %110 = vmatprep.subr.mxu0 0.0
  %111 = vmatpush1.msra.mxu0 0.0
  %112 = vmatprep.subr.mxu0 0.0
  %113 = vmatpush1.msra.mxu0 0.0
  %114 = vmatprep.subr.mxu0 0.0
  %115 = vmatpush1.msra.mxu0 0.0
  %116 = vmatprep.subr.mxu0 0.0
  %117 = vmatpush1.msra.mxu0 0.0
  %118 = vmatprep.subr.mxu0 0.0
  %119 = vmatpush1.msra.mxu0 0.0
  %120 = vmatprep.subr.mxu0 0.0
  %121 = vmatpush1.msra.mxu0 0.0
  %122 = vmatprep.subr.mxu0 0.0
  %123 = vmatpush1.msra.mxu0 0.0
  %124 = vmatprep.subr.mxu0 0.0
  %125 = vmatpush1.msra.mxu0 0.0
  %126 = vmatprep.subr.mxu0 0.0
  %127 = vmatpush1.msra.mxu0 0.0
  %128 = vmatprep.subr.mxu0 0.0
  %129 = vmatpush1.msra.mxu0 0.0
  %130 = vmatprep.subr.mxu0 0.0
  %131 = vmatpush1.msra.mxu0 0.0
  %132 = vmatprep.subr.mxu0 0.0
  %133 = vmatpush1.msra.mxu0 0.0
  %134 = vmatprep.subr.mxu0 0.0
  %135 = vmatpush1.msra.mxu0 0.0
  %136 = vmatprep.subr.mxu0 0.0
  %137 = vmatpush1.msra.mxu0 0.0
  %138 = vmatprep.subr.mxu0 0.0
  %139 = vmatpush1.msra.mxu0 0.0
  %140 = vmatprep.subr.mxu0 0.0
  %141 = vmatpush1.msra.mxu0 0.0
  %142 = vmatprep.subr.mxu0 0.0
  %143 = vmatpush1.msra.mxu0 0.0
  %144 = vmatprep.subr.mxu0 0.0
  %145 = vmatpush1.msra.mxu0 0.0
  %146 = vmatprep.subr.mxu0 0.0
  %147 = vmatpush1.msra.mxu0 0.0
  %148 = vmatprep.subr.mxu0 0.0
  %149 = vmatpush1.msra.mxu0 0.0
  %150 = vmatprep.subr.mxu0 0.0
  %151 = vmatpush1.msra.mxu0 0.0
  %152 = vmatprep.subr.mxu0 0.0
  %153 = vmatpush1.msra.mxu0 0.0
  %154 = vmatprep.subr.mxu0 0.0
  %155 = vmatpush1.msra.mxu0 0.0
  %156 = vmatprep.subr.mxu0 0.0
  %157 = vmatpush1.msra.mxu0 0.0
  %158 = vmatprep.subr.mxu0 0.0
  %159 = vmatpush1.msra.mxu0 0.0
  %160 = vmatprep.subr.mxu0 0.0
  %161 = vmatpush1.msra.mxu0 0.0
  %162 = vmatprep.subr.mxu0 0.0
  %163 = vmatpush1.msra.mxu0 0.0
  %164 = vmatprep.subr.mxu0 0.0
  %165 = vmatpush1.msra.mxu0 0.0
  %166 = vmatprep.subr.mxu0 0.0
  %167 = vmatpush1.msra.mxu0 0.0
  %168 = vmatprep.subr.mxu0 0.0
  %169 = vmatpush1.msra.mxu0 0.0
  %170 = vmatprep.subr.mxu0 0.0
  %171 = vmatpush1.msra.mxu0 0.0
  %172 = vmatprep.mubr.f32.mxu0 0.0
  %173 = vmatmul.mubr.f32.gmra.mrb[0].mxu0 %v85
  %v174 = vpop.f32.mrb[0].mxu0
  %v175 = vadd.f32 0.0, %v174
  %v176 = vpop.f32.mrb[0].mxu0
  %177 = vmatprep.mubr.f32.mxu0 0.0
  %178 = vmatmul.mubr.f32.gmra.mrb[0].mxu0 %v88
  %v179 = vpop.f32.mrb[0].mxu0
  %v180 = vadd.f32 0.0, %v179
  %v181 = vpop.f32.mrb[0].mxu0
  %182 = vmatprep.mubr.f32.mxu0 0.0
  %183 = vmatmul.mubr.f32.gmra.mrb[0].mxu0 %v91
  %v184 = vpop.f32.mrb[0].mxu0
  %v185 = vadd.f32 0.0, %v184
  %v186 = vpop.f32.mrb[0].mxu0
  %187 = vmatprep.mubr.f32.mxu0 0.0
  %188 = vmatmul.mubr.f32.gmra.mrb[0].mxu0 %v94
  %v189 = vpop.f32.mrb[0].mxu0
  %v190 = vadd.f32 0.0, %v189
  %v191 = vpop.f32.mrb[0].mxu0
  %192 = vmatprep.mubr.f32.mxu0 0.0
  %193 = vmatmul.mubr.f32.gmra.mrb[0].mxu0 %v97
  %v194 = vpop.f32.mrb[0].mxu0
  %v195 = vadd.f32 0.0, %v194
  %v196 = vpop.f32.mrb[0].mxu0
  %197 = vmatprep.mubr.f32.mxu0 0.0
  %198 = vmatmul.mubr.f32.gmra.mrb[0].mxu0 %v100
  %v199 = vpop.f32.mrb[0].mxu0
  %v200 = vadd.f32 0.0, %v199
  %v201 = vpop.f32.mrb[0].mxu0
  %202 = vmatprep.mubr.f32.mxu0 0.0
  %203 = vmatmul.mubr.f32.gmra.mrb[0].mxu0 %v103
  %v204 = vpop.f32.mrb[0].mxu0
  %v205 = vadd.f32 0.0, %v204
  %v206 = vpop.f32.mrb[0].mxu0
  %207 = vmatprep.mubr.f32.mxu0 0.0
  %208 = vmatmul.mubr.f32.gmra.mrb[0].mxu0 %v106
  %v209 = vpop.f32.mrb[0].mxu0
  %v210 = vadd.f32 0.0, %v209
  %v211 = vpop.f32.mrb[0].mxu0
  %212 = vdwg.mxu0
  %v213 = vmax.f32 %v175, 0.0
  %v214 = vmax.f32 %v180, 0.0
  %v215 = vmax.f32 %v185, 0.0
  %v216 = vmax.f32 %v190, 0.0
  %v217 = vmax.f32 %v195, 0.0
  %v218 = vmax.f32 %v200, 0.0
  %v219 = vmax.f32 %v205, 0.0
  %v220 = vmax.f32 %v210, 0.0
  %v221 = vld [vmem:[%s2] sm:$0xf]
  %v222 = vld [vmem:[%s2 + $0x4] sm:$0xf]
  %v223 = vld [vmem:[%s2 + $0x8] sm:$0xf]
  %v224 = vld [vmem:[%s2 + $0xc] sm:$0xf]
  %v225 = vld [vmem:[%s2 + $0x10] sm:$0xf]
  %v226 = vld [vmem:[%s2 + $0x14] sm:$0xf]
  %v227 = vld [vmem:[%s2 + $0x18] sm:$0xf]
  %v228 = vld [vmem:[%s2 + $0x1c] sm:$0xf]
  %v229 = vpack.c.bf16 %v214, %v213
  %v230 = vpack.c.bf16 %v216, %v215
  %v231 = vpack.c.bf16 %v218, %v217
  %v232 = vpack.c.bf16 %v220, %v219
  %v233 = vld [vmem:[%s3] sm:$0xff]
  %v234 = vld [vmem:[%s3 + $0x8] sm:$0xff]
  %v235 = vld [vmem:[%s3 + $0x10] sm:$0xff]
  %v236 = vld [vmem:[%s3 + $0x18] sm:$0xff]
  %v237 = vld [vmem:[%s3 + $0x20] sm:$0xff]
  %v238 = vld [vmem:[%s3 + $0x28] sm:$0xff]
  %v239 = vld [vmem:[%s3 + $0x30] sm:$0xff]
  %v240 = vld [vmem:[%s3 + $0x38] sm:$0xff]
  %242 = vset.pattern.permute.xlu0 0
  %243 = vperm.xlu0 %242, %v233
  %v244 = vpop.permute.xlu0 %243
  %247 = vset.pattern.permute.xlu0 0
  %248 = vperm.xlu0 %247, %v234
  %v249 = vpop.permute.xlu0 %248
  %252 = vset.pattern.permute.xlu0 0
  %253 = vperm.xlu0 %252, %v235
  %v254 = vpop.permute.xlu0 %253
  %257 = vset.pattern.permute.xlu0 0
  %258 = vperm.xlu0 %257, %v236
  %v259 = vpop.permute.xlu0 %258
  %262 = vset.pattern.permute.xlu0 0
  %263 = vperm.xlu0 %262, %v237
  %v264 = vpop.permute.xlu0 %263
  %267 = vset.pattern.permute.xlu0 0
  %268 = vperm.xlu0 %267, %v238
  %v269 = vpop.permute.xlu0 %268
  %272 = vset.pattern.permute.xlu0 0
  %273 = vperm.xlu0 %272, %v239
  %v274 = vpop.permute.xlu0 %273
  %277 = vset.pattern.permute.xlu0 0
  %278 = vperm.xlu0 %277, %v240
  %v279 = vpop.permute.xlu0 %278
  %v289 = vunpack.c.l.b16 %v221
  %v290 = vunpack.c.l.b16 %v222
  %v291 = vunpack.c.l.b16 %v223
  %v292 = vunpack.c.l.b16 %v224
  %v293 = vunpack.c.l.b16 %v225
  %v294 = vunpack.c.l.b16 %v226
  %v295 = vunpack.c.l.b16 %v227
  %v296 = vunpack.c.l.b16 %v228
  %v297 = vpack.c.b16 %v290, %v289
  %v298 = vpack.c.b16 %v292, %v291
  %v299 = vpack.c.b16 %v294, %v293
  %v300 = vpack.c.b16 %v296, %v295
  %vm301 = vcmask 523264
  %v303 = vsel %vm301, %v297, 0
  %v306 = vsel %vm301, %v298, 0
  %v309 = vsel %vm301, %v299, 0
  %v312 = vsel %vm301, %v300, 0
  %314 = vmatprep.subr.bf16.mxu0 0
  %315 = vmatpush1.bf16.msra.mxu0 %v229
  %316 = vmatprep.subr.bf16.mxu0 0
  %317 = vmatpush1.bf16.msra.mxu0 %v230
  %318 = vmatprep.subr.bf16.mxu0 0
  %319 = vmatpush1.bf16.msra.mxu0 %v231
  %320 = vmatprep.subr.bf16.mxu0 0
  %321 = vmatpush1.bf16.msra.mxu0 %v232
  %322 = vmatprep.subr.bf16.mxu0 0
  %323 = vmatpush1.bf16.msra.mxu0 0
  %324 = vmatprep.subr.bf16.mxu0 0
  %325 = vmatpush1.bf16.msra.mxu0 0
  %326 = vmatprep.subr.bf16.mxu0 0
  %327 = vmatpush1.bf16.msra.mxu0 0
  %328 = vmatprep.subr.bf16.mxu0 0
  %329 = vmatpush1.bf16.msra.mxu0 0
  %330 = vmatprep.subr.bf16.mxu0 0
  %331 = vmatpush1.bf16.msra.mxu0 0
  %332 = vmatprep.subr.bf16.mxu0 0
  %333 = vmatpush1.bf16.msra.mxu0 0
  %334 = vmatprep.subr.bf16.mxu0 0
  %335 = vmatpush1.bf16.msra.mxu0 0
  %336 = vmatprep.subr.bf16.mxu0 0
  %337 = vmatpush1.bf16.msra.mxu0 0
  %338 = vmatprep.subr.bf16.mxu0 0
  %339 = vmatpush1.bf16.msra.mxu0 0
  %340 = vmatprep.subr.bf16.mxu0 0
  %341 = vmatpush1.bf16.msra.mxu0 0
  %342 = vmatprep.subr.bf16.mxu0 0
  %343 = vmatpush1.bf16.msra.mxu0 0
  %344 = vmatprep.subr.bf16.mxu0 0
  %345 = vmatpush1.bf16.msra.mxu0 0
  %346 = vmatprep.mubr.bf16.mxu0 0
  %347 = vmatmul.mubr.bf16.gmra.mrb[0].mxu0 %v303
  %v348 = vpop.f32.mrb[0].mxu0
  %v349 = vadd.f32 %v244, %v348
  %v350 = vpop.f32.mrb[0].mxu0
  %v351 = vpop.f32.mrb[0].mxu0
  %v352 = vadd.f32 %v249, %v351
  %v353 = vpop.f32.mrb[0].mxu0
  %354 = vmatprep.mubr.bf16.mxu0 0
  %355 = vmatmul.mubr.bf16.gmra.mrb[0].mxu0 %v306
  %v356 = vpop.f32.mrb[0].mxu0
  %v357 = vadd.f32 %v254, %v356
  %v358 = vpop.f32.mrb[0].mxu0
  %v359 = vpop.f32.mrb[0].mxu0
  %v360 = vadd.f32 %v259, %v359
  %v361 = vpop.f32.mrb[0].mxu0
  %362 = vmatprep.mubr.bf16.mxu0 0
  %363 = vmatmul.mubr.bf16.gmra.mrb[0].mxu0 %v309
  %v364 = vpop.f32.mrb[0].mxu0
  %v365 = vadd.f32 %v264, %v364
  %v366 = vpop.f32.mrb[0].mxu0
  %v367 = vpop.f32.mrb[0].mxu0
  %v368 = vadd.f32 %v269, %v367
  %v369 = vpop.f32.mrb[0].mxu0
  %370 = vmatprep.mubr.bf16.mxu0 0
  %371 = vmatmul.mubr.bf16.gmra.mrb[0].mxu0 %v312
  %v372 = vpop.f32.mrb[0].mxu0
  %v373 = vadd.f32 %v274, %v372
  %v374 = vpop.f32.mrb[0].mxu0
  %v375 = vpop.f32.mrb[0].mxu0
  %v376 = vadd.f32 %v279, %v375
  %v377 = vpop.f32.mrb[0].mxu0
  %378 = vdwg.mxu0
  %v379 = vmax.f32 %v349, 0.0
  %v380 = vmax.f32 %v352, 0.0
  %v381 = vmax.f32 %v357, 0.0
  %v382 = vmax.f32 %v360, 0.0
  %v383 = vmax.f32 %v365, 0.0
  %v384 = vmax.f32 %v368, 0.0
  %v385 = vmax.f32 %v373, 0.0
  %v386 = vmax.f32 %v376, 0.0
  %v387 = vld [vmem:[%s4] sm:$0xf]
  %v388 = vpack.c.bf16 %v380, %v379
  %v389 = vpack.c.bf16 %v382, %v381
  %v390 = vpack.c.bf16 %v384, %v383
  %v391 = vpack.c.bf16 %v386, %v385
  %v392 = vld [vmem:[%s5] sm:$0xff]
  %394 = vset.pattern.permute.xlu0 0
  %395 = vperm.xlu0 %394, %v392
  %v396 = vpop.permute.xlu0 %395
  %v399 = vsel %vm301, %v387, 0
  %401 = vmatprep.subr.bf16.mxu0 0
  %402 = vmatpush1.bf16.msra.mxu0 %v388
  %403 = vmatprep.subr.bf16.mxu0 0
  %404 = vmatpush1.bf16.msra.mxu0 %v389
  %405 = vmatprep.subr.bf16.mxu0 0
  %406 = vmatpush1.bf16.msra.mxu0 %v390
  %407 = vmatprep.subr.bf16.mxu0 0
  %408 = vmatpush1.bf16.msra.mxu0 %v391
  %409 = vmatprep.subr.bf16.mxu0 0
  %410 = vmatpush1.bf16.msra.mxu0 0
  %411 = vmatprep.subr.bf16.mxu0 0
  %412 = vmatpush1.bf16.msra.mxu0 0
  %413 = vmatprep.subr.bf16.mxu0 0
  %414 = vmatpush1.bf16.msra.mxu0 0
  %415 = vmatprep.subr.bf16.mxu0 0
  %416 = vmatpush1.bf16.msra.mxu0 0
  %417 = vmatprep.subr.bf16.mxu0 0
  %418 = vmatpush1.bf16.msra.mxu0 0
  %419 = vmatprep.subr.bf16.mxu0 0
  %420 = vmatpush1.bf16.msra.mxu0 0
  %421 = vmatprep.subr.bf16.mxu0 0
  %422 = vmatpush1.bf16.msra.mxu0 0
  %423 = vmatprep.subr.bf16.mxu0 0
  %424 = vmatpush1.bf16.msra.mxu0 0
  %425 = vmatprep.subr.bf16.mxu0 0
  %426 = vmatpush1.bf16.msra.mxu0 0
  %427 = vmatprep.subr.bf16.mxu0 0
  %428 = vmatpush1.bf16.msra.mxu0 0
  %429 = vmatprep.subr.bf16.mxu0 0
  %430 = vmatpush1.bf16.msra.mxu0 0
  %431 = vmatprep.subr.bf16.mxu0 0
  %432 = vmatpush1.bf16.msra.mxu0 0
  %433 = vmatprep.mubr.bf16.mxu0 0
  %434 = vmatmul.mubr.bf16.gmra.mrb[0].mxu0 %v399
  %v435 = vpop.f32.mrb[0].mxu0
  %v436 = vadd.f32 %v396, %v435
  %v437 = vpop.f32.mrb[0].mxu0
  %v438 = vpop.f32.mrb[0].mxu0
  %v439 = vpop.f32.mrb[0].mxu0
  %440 = vdwg.mxu0
  %v441 = vpack.c.bf16 %v436, %v436
  %442 = vst [vmem:[%s6] sm:$0xf] %v441
  // Predicated region
  $region26: #{stylenet_forward.1} parent=0 // pred_check
    _
  $region27: #{stylenet_forward.1} parent=0 // pred_check_branch
    %444 = sbr.rel (0) target = $region29
  $region28: #{stylenet_forward.1} parent=0 // pred_region
    _
  $region29: #{stylenet_forward.1} parent=0 // pred_fallthru
    _
  // Predicated region
  $region30: #{stylenet_forward.1} parent=0 // pred_check
    _
  $region31: #{stylenet_forward.1} parent=0 // pred_check_branch
    %446 = sbr.rel (0) target = $region33
  $region32: #{stylenet_forward.1} parent=0 // pred_region
    _
  $region33: #{stylenet_forward.1} parent=0 // pred_fallthru
    _

</llo_original>
